<compile_context>
chip_gen: v7x
topology: tpu7x:2x2x1
jax: 0.10.0
libtpu: 0.0.40
codegen_flags: <defaults>
</compile_context>

<pallas_src>
import functools

import jax
import jax.numpy as jnp
from jax.experimental import pallas as pl
from jax.experimental.pallas import tpu as pltpu


def _round_up(x, m):
    return ((x + m - 1) // m) * m


def mil_kernel(x_ref, w_emb_ref, b_emb_ref, v_ref, w_att_ref,
               w_conn_ref, b_conn_ref, w_cls_ref, b_cls_ref,
               pred_ref, att_ref, feat_ref, aux_ref):
    BB, N, L = x_ref.shape
    D_emb = w_emb_ref.shape[1]
    bf16 = jnp.bfloat16

    # ---- instance_embedder: one big (BB*N, L) @ (L, D_emb) matmul + ReLU ----
    x2 = x_ref[...].reshape(BB * N, L)
    h = jnp.dot(x2.astype(bf16), w_emb_ref[...].astype(bf16),
                preferred_element_type=jnp.float32) + b_emb_ref[...]
    h = jnp.maximum(h, 0.0)                                    # (BB*N, D_emb) f32

    # ---- bag_aggregator: gated attention MIL pooling ----
    # tanh gate on the MXU, then the width-1 attention projection as a VPU
    # broadcast-multiply + lane reduction (no 1-column matmul, no transpose).
    a = jnp.tanh(jnp.dot(h.astype(bf16), v_ref[...].astype(bf16),
                         preferred_element_type=jnp.float32))  # (BB*N, D_att)
    gated = a * w_att_ref[...]                                 # (BB*N, D_att)
    logits = jnp.sum(gated.reshape(BB, N, -1), axis=-1)        # (BB, N), N on lanes

    # softmax over instances (lane reduction); reciprocal on the EUP.
    # TODO(synk): bag_lens masking not implemented (forward is called with bag_lens=None)
    m = jnp.max(logits, axis=-1, keepdims=True)
    e = jnp.exp(logits - m)
    att = e * pl.reciprocal(jnp.sum(e, axis=-1, keepdims=True), approx=True)  # (BB, N)

    # attention pooling: broadcast-multiply + reduce over N (no 1-row matmul).
    h3 = h.reshape(BB, N, D_emb)
    feat_bag = jnp.sum(att[:, :, None] * h3, axis=1)           # (BB, D_emb)

    # ---- class_connector: Linear + ReLU ----
    feat_conn = jnp.maximum(
        jnp.dot(feat_bag.astype(bf16), w_conn_ref[...].astype(bf16),
                preferred_element_type=jnp.float32) + b_conn_ref[...], 0.0)    # (BB, D_hid)

    # ---- classifier: Linear ----
    pred = jnp.dot(feat_conn.astype(bf16), w_cls_ref[...].astype(bf16),
                   preferred_element_type=jnp.float32) + b_cls_ref[...]        # (BB, C)

    pred_ref[...] = pred
    att_ref[...] = att
    feat_ref[...] = feat_conn
    aux_ref[...] = logits


@functools.partial(jax.jit, static_argnames=("bag_block",))
def mil_forward(x, params, *, bag_block=64):
    B, N, L = x.shape
    D_emb = params["w_emb"].shape[1]
    D_att = params["v"].shape[1]
    D_hid = params["w_conn"].shape[1]
    C = params["w_cls"].shape[1]

    # Bags-per-step block: multiple of 8 (sublane alignment), capped by bag_block.
    BB = min(_round_up(bag_block, 8), _round_up(B, 8))
    B_pad = _round_up(B, BB)
    if B_pad != B:
        x = jnp.pad(x, ((0, B_pad - B), (0, 0), (0, 0)))
    grid = (B_pad // BB,)

    def resident(shape):
        # Constant index map -> weight block is held in VMEM across grid steps.
        return pl.BlockSpec(shape, lambda g: (0,) * len(shape))

    out_shape = (
        jax.ShapeDtypeStruct((B_pad, C), jnp.float32),      # pred_bag
        jax.ShapeDtypeStruct((B_pad, N), jnp.float32),      # att_bag
        jax.ShapeDtypeStruct((B_pad, D_hid), jnp.float32),  # feat_bag
        jax.ShapeDtypeStruct((B_pad, N), jnp.float32),      # aux (raw att logits)
    )

    grid_spec = pltpu.PrefetchScalarGridSpec(
        num_scalar_prefetch=0,
        grid=grid,
        in_specs=[
            pl.BlockSpec((BB, N, L), lambda g: (g, 0, 0)),  # x, BB bags per step
            resident((L, D_emb)),                           # w_emb
            resident((1, D_emb)),                           # b_emb
            resident((D_emb, D_att)),                       # v (attention gate)
            resident((1, D_att)),                           # w_att (row vector)
            resident((D_emb, D_hid)),                       # w_conn
            resident((1, D_hid)),                           # b_conn
            resident((D_hid, C)),                           # w_cls
            resident((1, C)),                               # b_cls
        ],
        out_specs=[
            pl.BlockSpec((BB, C), lambda g: (g, 0)),
            pl.BlockSpec((BB, N), lambda g: (g, 0)),
            pl.BlockSpec((BB, D_hid), lambda g: (g, 0)),
            pl.BlockSpec((BB, N), lambda g: (g, 0)),
        ],
    )

    pred, att, feat, aux = pl.pallas_call(
        mil_kernel,
        out_shape=out_shape,
        grid_spec=grid_spec,
        compiler_params=pltpu.CompilerParams(dimension_semantics=("parallel",)),
    )(x, params["w_emb"], params["b_emb"], params["v"], params["w_att"],
      params["w_conn"], params["b_conn"], params["w_cls"], params["b_cls"])

    return pred[:B], att[:B], feat[:B], aux[:B]


def init_params(key, L, D_emb, D_att, D_hid, C):
    ks = jax.random.split(key, 5)

    def xavier(k, fan_in, fan_out):
        std = jnp.sqrt(2.0 / (fan_in + fan_out))
        return jax.random.normal(k, (fan_in, fan_out), jnp.float32) * std

    return {
        "w_emb":  xavier(ks[0], L, D_emb),
        "b_emb":  jnp.full((1, D_emb), 0.01, jnp.float32),
        "v":      xavier(ks[1], D_emb, D_att),
        "w_att":  xavier(ks[2], 1, D_att),      # attention vector stored as a row
        "w_conn": xavier(ks[3], D_emb, D_hid),
        "b_conn": jnp.full((1, D_hid), 0.01, jnp.float32),
        "w_cls":  xavier(ks[4], D_hid, C),
        "b_cls":  jnp.full((1, C), 0.01, jnp.float32),
    }


def mil_reference(x, p):
    # Pure-JAX reference with the same bf16-operand / f32-accumulate math.
    bf16 = jnp.bfloat16
    h = jnp.maximum(
        jnp.einsum("bnl,ld->bnd", x.astype(bf16), p["w_emb"].astype(bf16),
                   preferred_element_type=jnp.float32) + p["b_emb"][0], 0.0)
    a = jnp.tanh(jnp.einsum("bnd,da->bna", h.astype(bf16), p["v"].astype(bf16),
                            preferred_element_type=jnp.float32))
    logits = jnp.sum(a * p["w_att"][0], axis=-1)               # (B, N)
    att = jax.nn.softmax(logits, axis=-1)
    feat = jnp.einsum("bn,bnd->bd", att, h)
    feat = jnp.maximum(
        jnp.dot(feat.astype(bf16), p["w_conn"].astype(bf16),
                preferred_element_type=jnp.float32) + p["b_conn"][0], 0.0)
    pred = jnp.dot(feat.astype(bf16), p["w_cls"].astype(bf16),
                   preferred_element_type=jnp.float32) + p["b_cls"][0]
    return pred, att, feat, logits


if __name__ == "__main__":
    B, N, L = 2, 8, 32
    D_emb, D_att, D_hid, C = 64, 32, 32, 4

    key = jax.random.PRNGKey(0)
    kx, kp = jax.random.split(key)
    x = jax.random.normal(kx, (B, N, L), jnp.float32)
    params = init_params(kp, L, D_emb, D_att, D_hid, C)

    pred, att, feat, aux = mil_forward(x, params)
    jax.block_until_ready((pred, att, feat, aux))

    # sanity check vs pure-JAX reference (bf16 matmuls + approx reciprocal -> loose tol)
    r_pred, r_att, r_feat, r_aux = mil_reference(x, params)
    assert pred.shape == (B, C) and att.shape == (B, N)
    assert feat.shape == (B, D_hid) and aux.shape == (B, N)
    assert jnp.allclose(pred, r_pred, atol=2e-2, rtol=2e-2), "pred mismatch"
    assert jnp.allclose(att, r_att, atol=2e-2, rtol=2e-2), "att mismatch"
    assert jnp.allclose(feat, r_feat, atol=2e-2, rtol=2e-2), "feat mismatch"
    assert jnp.allclose(aux, r_aux, atol=2e-2, rtol=2e-2), "aux mismatch"

    print("KERNEL_OK")
</pallas_src>

<mosaic_0001>
module attributes {stable_mosaic.version = 11 : i64} {
  func.func @mil_kernel(%arg0: i32, %arg1: memref<8x8x32xf32, #tpu.memory_space<vmem>>, %arg2: memref<32x64xf32, #tpu.memory_space<vmem>>, %arg3: memref<1x64xf32, #tpu.memory_space<vmem>>, %arg4: memref<64x32xf32, #tpu.memory_space<vmem>>, %arg5: memref<1x32xf32, #tpu.memory_space<vmem>>, %arg6: memref<64x32xf32, #tpu.memory_space<vmem>>, %arg7: memref<1x32xf32, #tpu.memory_space<vmem>>, %arg8: memref<32x4xf32, #tpu.memory_space<vmem>>, %arg9: memref<1x4xf32, #tpu.memory_space<vmem>>, %arg10: memref<8x4xf32, #tpu.memory_space<vmem>>, %arg11: memref<8x8xf32, #tpu.memory_space<vmem>>, %arg12: memref<8x32xf32, #tpu.memory_space<vmem>>, %arg13: memref<8x8xf32, #tpu.memory_space<vmem>>) attributes {dimension_semantics = [#tpu.dimension_semantics<parallel>], iteration_bounds = array<i64: 1>, scalar_prefetch = 0 : i64, scratch_operands = 0 : i64, tpu.core_type = #tpu.core_type<tc>, window_params = [{transform_indices = @transform_0, window_bounds = array<i64: 8, 8, 32>}, {pipeline_mode = #tpu.pipeline_mode<synchronous>, transform_indices = @transform_1, window_bounds = array<i64: 32, 64>}, {pipeline_mode = #tpu.pipeline_mode<synchronous>, transform_indices = @transform_2, window_bounds = array<i64: 1, 64>}, {pipeline_mode = #tpu.pipeline_mode<synchronous>, transform_indices = @transform_3, window_bounds = array<i64: 64, 32>}, {pipeline_mode = #tpu.pipeline_mode<synchronous>, transform_indices = @transform_4, window_bounds = array<i64: 1, 32>}, {pipeline_mode = #tpu.pipeline_mode<synchronous>, transform_indices = @transform_5, window_bounds = array<i64: 64, 32>}, {pipeline_mode = #tpu.pipeline_mode<synchronous>, transform_indices = @transform_6, window_bounds = array<i64: 1, 32>}, {pipeline_mode = #tpu.pipeline_mode<synchronous>, transform_indices = @transform_7, window_bounds = array<i64: 32, 4>}, {pipeline_mode = #tpu.pipeline_mode<synchronous>, transform_indices = @transform_8, window_bounds = array<i64: 1, 4>}, {transform_indices = @transform_9, window_bounds = array<i64: 8, 4>}, {transform_indices = @transform_10, window_bounds = array<i64: 8, 8>}, {transform_indices = @transform_11, window_bounds = array<i64: 8, 32>}, {transform_indices = @transform_12, window_bounds = array<i64: 8, 8>}]} {
    %c0 = arith.constant 0 : index
    %c0_0 = arith.constant 0 : index
    %c0_1 = arith.constant 0 : index
    %0 = vector.load %arg1[%c0, %c0_0, %c0_1] : memref<8x8x32xf32, #tpu.memory_space<vmem>>, vector<8x8x32xf32>
    %1 = vector.shape_cast %0 : vector<8x8x32xf32> to vector<64x32xf32>
    %2 = arith.truncf %1 : vector<64x32xf32> to vector<64x32xbf16>
    %c0_2 = arith.constant 0 : index
    %c0_3 = arith.constant 0 : index
    %3 = vector.load %arg2[%c0_2, %c0_3] : memref<32x64xf32, #tpu.memory_space<vmem>>, vector<32x64xf32>
    %4 = arith.truncf %3 : vector<32x64xf32> to vector<32x64xbf16>
    %cst = arith.constant dense<0.000000e+00> : vector<64x64xf32>
    %5 = tpu.matmul %2, %4, %cst {dimension_numbers = #tpu.dot_dimension_numbers<[1], [0], [0], [1], [0, 0, 1, 1], [], []>} : vector<64x32xbf16>, vector<32x64xbf16>, vector<64x64xf32> -> vector<64x64xf32>
    %c0_4 = arith.constant 0 : index
    %c0_5 = arith.constant 0 : index
    %6 = vector.load %arg3[%c0_4, %c0_5] : memref<1x64xf32, #tpu.memory_space<vmem>>, vector<1x64xf32>
    %7 = vector.broadcast %6 : vector<1x64xf32> to vector<64x64xf32>
    %8 = arith.addf %5, %7 : vector<64x64xf32>
    %cst_6 = arith.constant 0.000000e+00 : f32
    %9 = vector.broadcast %cst_6 : f32 to vector<64x64xf32>
    %10 = arith.maximumf %8, %9 : vector<64x64xf32>
    %11 = arith.truncf %10 : vector<64x64xf32> to vector<64x64xbf16>
    %c0_7 = arith.constant 0 : index
    %c0_8 = arith.constant 0 : index
    %12 = vector.load %arg4[%c0_7, %c0_8] : memref<64x32xf32, #tpu.memory_space<vmem>>, vector<64x32xf32>
    %13 = arith.truncf %12 : vector<64x32xf32> to vector<64x32xbf16>
    %cst_9 = arith.constant dense<0.000000e+00> : vector<64x32xf32>
    %14 = tpu.matmul %11, %13, %cst_9 {dimension_numbers = #tpu.dot_dimension_numbers<[1], [0], [0], [1], [0, 0, 1, 1], [], []>} : vector<64x64xbf16>, vector<64x32xbf16>, vector<64x32xf32> -> vector<64x32xf32>
    %15 = math.tanh %14 : vector<64x32xf32>
    %c0_10 = arith.constant 0 : index
    %c0_11 = arith.constant 0 : index
    %16 = vector.load %arg5[%c0_10, %c0_11] : memref<1x32xf32, #tpu.memory_space<vmem>>, vector<1x32xf32>
    %17 = vector.broadcast %16 : vector<1x32xf32> to vector<64x32xf32>
    %18 = arith.mulf %15, %17 : vector<64x32xf32>
    %19 = vector.shape_cast %18 : vector<64x32xf32> to vector<8x8x32xf32>
    %cst_12 = arith.constant dense<0.000000e+00> : vector<8x8xf32>
    %20 = vector.multi_reduction <add>, %19, %cst_12 [2] : vector<8x8x32xf32> to vector<8x8xf32>
    %cst_13 = arith.constant dense<0xFF800000> : vector<8xf32>
    %21 = vector.multi_reduction <maximumf>, %20, %cst_13 [1] : vector<8x8xf32> to vector<8xf32>
    %22 = vector.shape_cast %21 : vector<8xf32> to vector<8x1xf32>
    %23 = vector.broadcast %22 : vector<8x1xf32> to vector<8x8xf32>
    %24 = arith.subf %20, %23 : vector<8x8xf32>
    %25 = math.exp %24 : vector<8x8xf32>
    %cst_14 = arith.constant dense<0.000000e+00> : vector<8xf32>
    %26 = vector.multi_reduction <add>, %25, %cst_14 [1] : vector<8x8xf32> to vector<8xf32>
    %27 = vector.shape_cast %26 : vector<8xf32> to vector<8x1xf32>
    %28 = tpu.reciprocal %27 {approx = true} : vector<8x1xf32> -> vector<8x1xf32>
    %29 = vector.broadcast %28 : vector<8x1xf32> to vector<8x8xf32>
    %30 = arith.mulf %25, %29 : vector<8x8xf32>
    %31 = vector.shape_cast %10 : vector<64x64xf32> to vector<8x8x64xf32>
    %32 = vector.shape_cast %30 : vector<8x8xf32> to vector<8x8x1xf32>
    %33 = vector.broadcast %32 : vector<8x8x1xf32> to vector<8x8x64xf32>
    %34 = arith.mulf %33, %31 : vector<8x8x64xf32>
    %cst_15 = arith.constant dense<0.000000e+00> : vector<8x64xf32>
    %35 = vector.multi_reduction <add>, %34, %cst_15 [1] : vector<8x8x64xf32> to vector<8x64xf32>
    %36 = arith.truncf %35 : vector<8x64xf32> to vector<8x64xbf16>
    %c0_16 = arith.constant 0 : index
    %c0_17 = arith.constant 0 : index
    %37 = vector.load %arg6[%c0_16, %c0_17] : memref<64x32xf32, #tpu.memory_space<vmem>>, vector<64x32xf32>
    %38 = arith.truncf %37 : vector<64x32xf32> to vector<64x32xbf16>
    %cst_18 = arith.constant dense<0.000000e+00> : vector<8x32xf32>
    %39 = tpu.matmul %36, %38, %cst_18 {dimension_numbers = #tpu.dot_dimension_numbers<[1], [0], [0], [1], [0, 0, 1, 1], [], []>} : vector<8x64xbf16>, vector<64x32xbf16>, vector<8x32xf32> -> vector<8x32xf32>
    %c0_19 = arith.constant 0 : index
    %c0_20 = arith.constant 0 : index
    %40 = vector.load %arg7[%c0_19, %c0_20] : memref<1x32xf32, #tpu.memory_space<vmem>>, vector<1x32xf32>
    %41 = vector.broadcast %40 : vector<1x32xf32> to vector<8x32xf32>
    %42 = arith.addf %39, %41 : vector<8x32xf32>
    %cst_21 = arith.constant 0.000000e+00 : f32
    %43 = vector.broadcast %cst_21 : f32 to vector<8x32xf32>
    %44 = arith.maximumf %42, %43 : vector<8x32xf32>
    %45 = arith.truncf %44 : vector<8x32xf32> to vector<8x32xbf16>
    %c0_22 = arith.constant 0 : index
    %c0_23 = arith.constant 0 : index
    %46 = vector.load %arg8[%c0_22, %c0_23] : memref<32x4xf32, #tpu.memory_space<vmem>>, vector<32x4xf32>
    %47 = arith.truncf %46 : vector<32x4xf32> to vector<32x4xbf16>
    %cst_24 = arith.constant dense<0.000000e+00> : vector<8x4xf32>
    %48 = tpu.matmul %45, %47, %cst_24 {dimension_numbers = #tpu.dot_dimension_numbers<[1], [0], [0], [1], [0, 0, 1, 1], [], []>} : vector<8x32xbf16>, vector<32x4xbf16>, vector<8x4xf32> -> vector<8x4xf32>
    %c0_25 = arith.constant 0 : index
    %c0_26 = arith.constant 0 : index
    %49 = vector.load %arg9[%c0_25, %c0_26] : memref<1x4xf32, #tpu.memory_space<vmem>>, vector<1x4xf32>
    %50 = vector.broadcast %49 : vector<1x4xf32> to vector<8x4xf32>
    %51 = arith.addf %48, %50 : vector<8x4xf32>
    %c0_27 = arith.constant 0 : index
    %c0_28 = arith.constant 0 : index
    %52 = vector.load %arg10[%c0_27, %c0_28] : memref<8x4xf32, #tpu.memory_space<vmem>>, vector<8x4xf32>
    tpu.vector_store %arg10[%c0_27, %c0_28], %51 {strides = array<i32>} : memref<8x4xf32, #tpu.memory_space<vmem>>, vector<8x4xf32>,
    %c0_29 = arith.constant 0 : index
    %c0_30 = arith.constant 0 : index
    %53 = vector.load %arg11[%c0_29, %c0_30] : memref<8x8xf32, #tpu.memory_space<vmem>>, vector<8x8xf32>
    tpu.vector_store %arg11[%c0_29, %c0_30], %30 {strides = array<i32>} : memref<8x8xf32, #tpu.memory_space<vmem>>, vector<8x8xf32>,
    %c0_31 = arith.constant 0 : index
    %c0_32 = arith.constant 0 : index
    %54 = vector.load %arg12[%c0_31, %c0_32] : memref<8x32xf32, #tpu.memory_space<vmem>>, vector<8x32xf32>
    tpu.vector_store %arg12[%c0_31, %c0_32], %44 {strides = array<i32>} : memref<8x32xf32, #tpu.memory_space<vmem>>, vector<8x32xf32>,
    %c0_33 = arith.constant 0 : index
    %c0_34 = arith.constant 0 : index
    %55 = vector.load %arg13[%c0_33, %c0_34] : memref<8x8xf32, #tpu.memory_space<vmem>>, vector<8x8xf32>
    tpu.vector_store %arg13[%c0_33, %c0_34], %20 {strides = array<i32>} : memref<8x8xf32, #tpu.memory_space<vmem>>, vector<8x8xf32>,
    return
  }
  func.func @transform_0(%arg0: i32) -> (i32, i32, i32) {
    %c0_i32 = arith.constant 0 : i32
    %c0_i32_0 = arith.constant 0 : i32
    %c0_i32_1 = arith.constant 0 : i32
    return %arg0, %c0_i32, %c0_i32_0 : i32, i32, i32
  }
  func.func @transform_1(%arg0: i32) -> (i32, i32) {
    %c0_i32 = arith.constant 0 : i32
    %c0_i32_0 = arith.constant 0 : i32
    %c0_i32_1 = arith.constant 0 : i32
    return %c0_i32, %c0_i32_0 : i32, i32
  }
  func.func @transform_2(%arg0: i32) -> (i32, i32) {
    %c0_i32 = arith.constant 0 : i32
    %c0_i32_0 = arith.constant 0 : i32
    %c0_i32_1 = arith.constant 0 : i32
    return %c0_i32, %c0_i32_0 : i32, i32
  }
  func.func @transform_3(%arg0: i32) -> (i32, i32) {
    %c0_i32 = arith.constant 0 : i32
    %c0_i32_0 = arith.constant 0 : i32
    %c0_i32_1 = arith.constant 0 : i32
    return %c0_i32, %c0_i32_0 : i32, i32
  }
  func.func @transform_4(%arg0: i32) -> (i32, i32) {
    %c0_i32 = arith.constant 0 : i32
    %c0_i32_0 = arith.constant 0 : i32
    %c0_i32_1 = arith.constant 0 : i32
    return %c0_i32, %c0_i32_0 : i32, i32
  }
  func.func @transform_5(%arg0: i32) -> (i32, i32) {
    %c0_i32 = arith.constant 0 : i32
    %c0_i32_0 = arith.constant 0 : i32
    %c0_i32_1 = arith.constant 0 : i32
    return %c0_i32, %c0_i32_0 : i32, i32
  }
  func.func @transform_6(%arg0: i32) -> (i32, i32) {
    %c0_i32 = arith.constant 0 : i32
    %c0_i32_0 = arith.constant 0 : i32
    %c0_i32_1 = arith.constant 0 : i32
    return %c0_i32, %c0_i32_0 : i32, i32
  }
  func.func @transform_7(%arg0: i32) -> (i32, i32) {
    %c0_i32 = arith.constant 0 : i32
    %c0_i32_0 = arith.constant 0 : i32
    %c0_i32_1 = arith.constant 0 : i32
    return %c0_i32, %c0_i32_0 : i32, i32
  }
  func.func @transform_8(%arg0: i32) -> (i32, i32) {
    %c0_i32 = arith.constant 0 : i32
    %c0_i32_0 = arith.constant 0 : i32
    %c0_i32_1 = arith.constant 0 : i32
    return %c0_i32, %c0_i32_0 : i32, i32
  }
  func.func @transform_9(%arg0: i32) -> (i32, i32) {
    %c0_i32 = arith.constant 0 : i32
    %c0_i32_0 = arith.constant 0 : i32
    return %arg0, %c0_i32 : i32, i32
  }
  func.func @transform_10(%arg0: i32) -> (i32, i32) {
    %c0_i32 = arith.constant 0 : i32
    %c0_i32_0 = arith.constant 0 : i32
    return %arg0, %c0_i32 : i32, i32
  }
  func.func @transform_11(%arg0: i32) -> (i32, i32) {
    %c0_i32 = arith.constant 0 : i32
    %c0_i32_0 = arith.constant 0 : i32
    return %arg0, %c0_i32 : i32, i32
  }
  func.func @transform_12(%arg0: i32) -> (i32, i32) {
    %c0_i32 = arith.constant 0 : i32
    %c0_i32_0 = arith.constant 0 : i32
    return %arg0, %c0_i32 : i32, i32
  }
}

</mosaic_0001>

<llo_original>
// kernel: mil_forward.1
$region0: #{mil_forward.1}
  #allocation0 [shape = 'u32[]', space=smem, size = 0x4, offset = 0x4, fixed_abs, tag = 'smem constant byte address 0x4 - core index']
  #allocation1 [shape = 'u32[144,128]{1,0:T(1,128)}', space=vmem, size = 0x12000, scoped, tag = 'internal scratch']
  %s0 = inlined_call_operand.vmem [shape: f32[8,8,32], index: 0, kind: input, shape index: {}]
  %s1 = inlined_call_operand.vmem [shape: f32[32,64], index: 1, kind: input, shape index: {}]
  %s2 = inlined_call_operand.vmem [shape: f32[1,64], index: 2, kind: input, shape index: {}]
  %s3 = inlined_call_operand.vmem [shape: f32[64,32], index: 3, kind: input, shape index: {}]
  %s4 = inlined_call_operand.vmem [shape: f32[1,32], index: 4, kind: input, shape index: {}]
  %s5 = inlined_call_operand.vmem [shape: f32[64,32], index: 5, kind: input, shape index: {}]
  %s6 = inlined_call_operand.vmem [shape: f32[1,32], index: 6, kind: input, shape index: {}]
  %s7 = inlined_call_operand.vmem [shape: f32[32,4], index: 7, kind: input, shape index: {}]
  %s8 = inlined_call_operand.vmem [shape: f32[1,4], index: 8, kind: input, shape index: {}]
  %s9 = inlined_call_operand.vmem [shape: f32[8,4], index: 9, kind: output, shape index: {0}]
  %s10 = inlined_call_operand.vmem [shape: f32[8,8], index: 10, kind: output, shape index: {1}]
  %s11 = inlined_call_operand.vmem [shape: f32[8,32], index: 11, kind: output, shape index: {2}]
  %s12 = inlined_call_operand.vmem [shape: f32[8,8], index: 12, kind: output, shape index: {3}]
  %13 = xla_tuple %s9, %s10, %s11, %s12
  %s14 = sld [smem:[#allocation0]]
  $region70: #{mil_forward.1} parent=0
    _
  %s16 = ssub.s32 1, %s14
  %s17 = scalar_select 0, %s16, %s14
  // Predicated region
  $region2: #{mil_forward.1} parent=0 // pred_check
    _
  $region3: #{mil_forward.1} parent=0 // pred_check_branch
    %19 = sbr.rel (0) target = $region5
  $region4: #{mil_forward.1} parent=0 // pred_region
    _
  $region5: #{mil_forward.1} parent=0 // pred_fallthru
    _
  // Predicated region
  $region6: #{mil_forward.1} parent=0 // pred_check
    _
  $region7: #{mil_forward.1} parent=0 // pred_check_branch
    %21 = sbr.rel (0) target = $region9
  $region8: #{mil_forward.1} parent=0 // pred_region
    _
  $region9: #{mil_forward.1} parent=0 // pred_fallthru
    _
  // Predicated region
  $region10: #{mil_forward.1} parent=0 // pred_check
    _
  $region11: #{mil_forward.1} parent=0 // pred_check_branch
    %23 = sbr.rel (0) target = $region13
  $region12: #{mil_forward.1} parent=0 // pred_region
    _
  $region13: #{mil_forward.1} parent=0 // pred_fallthru
    _
  // Predicated region
  $region14: #{mil_forward.1} parent=0 // pred_check
    _
  $region15: #{mil_forward.1} parent=0 // pred_check_branch
    %25 = sbr.rel (0) target = $region17
  $region16: #{mil_forward.1} parent=0 // pred_region
    _
  $region17: #{mil_forward.1} parent=0 // pred_fallthru
    _
  // Predicated region
  $region18: #{mil_forward.1} parent=0 // pred_check
    _
  $region19: #{mil_forward.1} parent=0 // pred_check_branch
    %27 = sbr.rel (0) target = $region21
  $region20: #{mil_forward.1} parent=0 // pred_region
    _
  $region21: #{mil_forward.1} parent=0 // pred_fallthru
    _
  // Predicated region
  $region22: #{mil_forward.1} parent=0 // pred_check
    _
  $region23: #{mil_forward.1} parent=0 // pred_check_branch
    %29 = sbr.rel (0) target = $region25
  $region24: #{mil_forward.1} parent=0 // pred_region
    _
  $region25: #{mil_forward.1} parent=0 // pred_fallthru
    _
  // Predicated region
  $region26: #{mil_forward.1} parent=0 // pred_check
    _
  $region27: #{mil_forward.1} parent=0 // pred_check_branch
    %31 = sbr.rel (0) target = $region29
  $region28: #{mil_forward.1} parent=0 // pred_region
    _
  $region29: #{mil_forward.1} parent=0 // pred_fallthru
    _
  // Predicated region
  $region30: #{mil_forward.1} parent=0 // pred_check
    _
  $region31: #{mil_forward.1} parent=0 // pred_check_branch
    %33 = sbr.rel (0) target = $region33
  $region32: #{mil_forward.1} parent=0 // pred_region
    _
  $region33: #{mil_forward.1} parent=0 // pred_fallthru
    _
  // Predicated region
  $region34: #{mil_forward.1} parent=0 // pred_check
    _
  $region35: #{mil_forward.1} parent=0 // pred_check_branch
    %35 = sbr.rel (0) target = $region37
  $region36: #{mil_forward.1} parent=0 // pred_region
    _
  $region37: #{mil_forward.1} parent=0 // pred_fallthru
    _
  %v37 = vld [vmem:[%s0] sm:$0xff]
  %v38 = vld [vmem:[%s0 + $0x8] sm:$0xff]
  %v39 = vld [vmem:[%s0 + $0x10] sm:$0xff]
  %v40 = vld [vmem:[%s0 + $0x18] sm:$0xff]
  %v41 = vld [vmem:[%s0 + $0x20] sm:$0xff]
  %v42 = vld [vmem:[%s0 + $0x28] sm:$0xff]
  %v43 = vld [vmem:[%s0 + $0x30] sm:$0xff]
  %v44 = vld [vmem:[%s0 + $0x38] sm:$0xff]
  %v45 = vpack.c.bf16 %v38, %v37
  %v46 = vpack.c.bf16 %v40, %v39
  %v47 = vpack.c.bf16 %v42, %v41
  %v48 = vpack.c.bf16 %v44, %v43
  %v49 = vld [vmem:[%s1] sm:$0xff]
  %v50 = vld [vmem:[%s1 + $0x8] sm:$0xff]
  %v51 = vld [vmem:[%s1 + $0x10] sm:$0xff]
  %v52 = vld [vmem:[%s1 + $0x18] sm:$0xff]
  %v53 = vpack.c.bf16 %v50, %v49
  %v54 = vpack.c.bf16 %v52, %v51
  %v55 = vld [vmem:[%s2] sm:$0x1]
  %v57 = vlaneseq
  %v58 = vshrl.u32 %v57, 7
  %v59 = vsub.s32 0, %v58
  %v60 = vrot.slane %v55, %v59
  %vm62 = vcmask 261120
  %v64 = vsel %vm62, %v45, 0
  %v67 = vsel %vm62, %v46, 0
  %v70 = vsel %vm62, %v47, 0
  %v73 = vsel %vm62, %v48, 0
  %75 = vmatprep.subr.bf16.mxu0 0
  %76 = vmatpush1.bf16.msra.mxu0 %v53
  %77 = vmatprep.subr.bf16.mxu0 0
  %78 = vmatpush1.bf16.msra.mxu0 %v54
  %79 = vmatprep.subr.bf16.mxu0 0
  %80 = vmatpush1.bf16.msra.mxu0 0
  %81 = vmatprep.subr.bf16.mxu0 0
  %82 = vmatpush1.bf16.msra.mxu0 0
  %83 = vmatprep.subr.bf16.mxu0 0
  %84 = vmatpush1.bf16.msra.mxu0 0
  %85 = vmatprep.subr.bf16.mxu0 0
  %86 = vmatpush1.bf16.msra.mxu0 0
  %87 = vmatprep.subr.bf16.mxu0 0
  %88 = vmatpush1.bf16.msra.mxu0 0
  %89 = vmatprep.subr.bf16.mxu0 0
  %90 = vmatpush1.bf16.msra.mxu0 0
  %91 = vmatprep.subr.bf16.mxu0 0
  %92 = vmatpush1.bf16.msra.mxu0 0
  %93 = vmatprep.subr.bf16.mxu0 0
  %94 = vmatpush1.bf16.msra.mxu0 0
  %95 = vmatprep.subr.bf16.mxu0 0
  %96 = vmatpush1.bf16.msra.mxu0 0
  %97 = vmatprep.subr.bf16.mxu0 0
  %98 = vmatpush1.bf16.msra.mxu0 0
  %99 = vmatprep.subr.bf16.mxu0 0
  %100 = vmatpush1.bf16.msra.mxu0 0
  %101 = vmatprep.subr.bf16.mxu0 0
  %102 = vmatpush1.bf16.msra.mxu0 0
  %103 = vmatprep.subr.bf16.mxu0 0
  %104 = vmatpush1.bf16.msra.mxu0 0
  %105 = vmatprep.subr.bf16.mxu0 0
  %106 = vmatpush1.bf16.msra.mxu0 0
  %107 = vmatprep.mubr.bf16.mxu0 0
  %108 = vmatmul.mubr.bf16.gmra.mrb[0].mxu0 %v64
  %v109 = vpop.f32.mrb[0].mxu0
  %v110 = vadd.f32 %v60, %v109
  %v111 = vpop.f32.mrb[0].mxu0
  %v112 = vpop.f32.mrb[0].mxu0
  %v113 = vadd.f32 %v60, %v112
  %v114 = vpop.f32.mrb[0].mxu0
  %115 = vmatprep.mubr.bf16.mxu0 0
  %116 = vmatmul.mubr.bf16.gmra.mrb[0].mxu0 %v67
  %v117 = vpop.f32.mrb[0].mxu0
  %v118 = vadd.f32 %v60, %v117
  %v119 = vpop.f32.mrb[0].mxu0
  %v120 = vpop.f32.mrb[0].mxu0
  %v121 = vadd.f32 %v60, %v120
  %v122 = vpop.f32.mrb[0].mxu0
  %123 = vmatprep.mubr.bf16.mxu0 0
  %124 = vmatmul.mubr.bf16.gmra.mrb[0].mxu0 %v70
  %v125 = vpop.f32.mrb[0].mxu0
  %v126 = vadd.f32 %v60, %v125
  %v127 = vpop.f32.mrb[0].mxu0
  %v128 = vpop.f32.mrb[0].mxu0
  %v129 = vadd.f32 %v60, %v128
  %v130 = vpop.f32.mrb[0].mxu0
  %131 = vmatprep.mubr.bf16.mxu0 0
  %132 = vmatmul.mubr.bf16.gmra.mrb[0].mxu0 %v73
  %v133 = vpop.f32.mrb[0].mxu0
  %v134 = vadd.f32 %v60, %v133
  %v135 = vpop.f32.mrb[0].mxu0
  %v136 = vpop.f32.mrb[0].mxu0
  %v137 = vadd.f32 %v60, %v136
  %v138 = vpop.f32.mrb[0].mxu0
  %139 = vdwg.mxu0
  %v140 = vmax.f32 %v110, 0.0
  %v141 = vmax.f32 %v113, 0.0
  %v142 = vmax.f32 %v118, 0.0
  %v143 = vmax.f32 %v121, 0.0
  %v144 = vmax.f32 %v126, 0.0
  %v145 = vmax.f32 %v129, 0.0
  %v146 = vmax.f32 %v134, 0.0
  %v147 = vmax.f32 %v137, 0.0
  %v148 = vpack.c.bf16 %v141, %v140
  %v149 = vpack.c.bf16 %v143, %v142
  %v150 = vpack.c.bf16 %v145, %v144
  %v151 = vpack.c.bf16 %v147, %v146
  %v152 = vld [vmem:[%s3] sm:$0xff]
  %v153 = vld [vmem:[%s3 + $0x8] sm:$0xff]
  %v154 = vld [vmem:[%s3 + $0x10] sm:$0xff]
  %v155 = vld [vmem:[%s3 + $0x18] sm:$0xff]
  %v156 = vld [vmem:[%s3 + $0x20] sm:$0xff]
  %v157 = vld [vmem:[%s3 + $0x28] sm:$0xff]
  %v158 = vld [vmem:[%s3 + $0x30] sm:$0xff]
  %v159 = vld [vmem:[%s3 + $0x38] sm:$0xff]
  %v160 = vpack.c.bf16 %v153, %v152
  %v161 = vpack.c.bf16 %v155, %v154
  %v162 = vpack.c.bf16 %v157, %v156
  %v163 = vpack.c.bf16 %v159, %v158
  %vm164 = vcmask 523264
  %v166 = vsel %vm164, %v148, 0
  %v169 = vsel %vm164, %v149, 0
  %v172 = vsel %vm164, %v150, 0
  %v175 = vsel %vm164, %v151, 0
  %177 = vmatprep.subr.bf16.mxu0 0
  %178 = vmatpush1.bf16.msra.mxu0 %v160
  %179 = vmatprep.subr.bf16.mxu0 0
  %180 = vmatpush1.bf16.msra.mxu0 %v161
  %181 = vmatprep.subr.bf16.mxu0 0
  %182 = vmatpush1.bf16.msra.mxu0 %v162
  %183 = vmatprep.subr.bf16.mxu0 0
  %184 = vmatpush1.bf16.msra.mxu0 %v163
  %185 = vmatprep.subr.bf16.mxu0 0
  %186 = vmatpush1.bf16.msra.mxu0 0
  %187 = vmatprep.subr.bf16.mxu0 0
  %188 = vmatpush1.bf16.msra.mxu0 0
  %189 = vmatprep.subr.bf16.mxu0 0
  %190 = vmatpush1.bf16.msra.mxu0 0
  %191 = vmatprep.subr.bf16.mxu0 0
  %192 = vmatpush1.bf16.msra.mxu0 0
  %193 = vmatprep.subr.bf16.mxu0 0
  %194 = vmatpush1.bf16.msra.mxu0 0
  %195 = vmatprep.subr.bf16.mxu0 0
  %196 = vmatpush1.bf16.msra.mxu0 0
  %197 = vmatprep.subr.bf16.mxu0 0
  %198 = vmatpush1.bf16.msra.mxu0 0
  %199 = vmatprep.subr.bf16.mxu0 0
  %200 = vmatpush1.bf16.msra.mxu0 0
  %201 = vmatprep.subr.bf16.mxu0 0
  %202 = vmatpush1.bf16.msra.mxu0 0
  %203 = vmatprep.subr.bf16.mxu0 0
  %204 = vmatpush1.bf16.msra.mxu0 0
  %205 = vmatprep.subr.bf16.mxu0 0
  %206 = vmatpush1.bf16.msra.mxu0 0
  %207 = vmatprep.subr.bf16.mxu0 0
  %208 = vmatpush1.bf16.msra.mxu0 0
  %209 = vmatprep.mubr.bf16.mxu0 0
  %210 = vmatmul.mubr.bf16.gmra.mrb[0].mxu0 %v166
  %v211 = vpop.f32.mrb[0].mxu0
  %v212 = vadd.f32 0.0, %v211
  %v213 = vpop.f32.mrb[0].mxu0
  %v214 = vpop.f32.mrb[0].mxu0
  %v215 = vadd.f32 0.0, %v214
  %v216 = vpop.f32.mrb[0].mxu0
  %217 = vmatprep.mubr.bf16.mxu0 0
  %218 = vmatmul.mubr.bf16.gmra.mrb[0].mxu0 %v169
  %v219 = vpop.f32.mrb[0].mxu0
  %v220 = vadd.f32 0.0, %v219
  %v221 = vpop.f32.mrb[0].mxu0
  %v222 = vpop.f32.mrb[0].mxu0
  %v223 = vadd.f32 0.0, %v222
  %v224 = vpop.f32.mrb[0].mxu0
  %225 = vmatprep.mubr.bf16.mxu0 0
  %226 = vmatmul.mubr.bf16.gmra.mrb[0].mxu0 %v172
  %v227 = vpop.f32.mrb[0].mxu0
  %v228 = vadd.f32 0.0, %v227
  %v229 = vpop.f32.mrb[0].mxu0
  %v230 = vpop.f32.mrb[0].mxu0
  %v231 = vadd.f32 0.0, %v230
  %v232 = vpop.f32.mrb[0].mxu0
  %233 = vmatprep.mubr.bf16.mxu0 0
  %234 = vmatmul.mubr.bf16.gmra.mrb[0].mxu0 %v175
  %v235 = vpop.f32.mrb[0].mxu0
  %v236 = vadd.f32 0.0, %v235
  %v237 = vpop.f32.mrb[0].mxu0
  %v238 = vpop.f32.mrb[0].mxu0
  %v239 = vadd.f32 0.0, %v238
  %v240 = vpop.f32.mrb[0].mxu0
  %241 = vdwg.mxu0
  %v242 = vtanh.pop %v212
  %v243 = vtanh.pop %v215
  %v244 = vtanh.pop %v220
  %v245 = vtanh.pop %v223
  %v246 = vtanh.pop %v228
  %v247 = vtanh.pop %v231
  %v248 = vtanh.pop %v236
  %v249 = vtanh.pop %v239
  %v250 = vld [vmem:[%s4] sm:$0x1]
  %v252 = vlaneseq
  %v253 = vshrl.u32 %v252, 7
  %v254 = vsub.s32 0, %v253
  %v255 = vrot.slane %v250, %v254
  %v257 = vmul.f32 %v242, %v255
  %v258 = vmul.f32 %v243, %v255
  %v259 = vmul.f32 %v244, %v255
  %v260 = vmul.f32 %v245, %v255
  %v261 = vmul.f32 %v246, %v255
  %v262 = vmul.f32 %v247, %v255
  %v263 = vmul.f32 %v248, %v255
  %v264 = vmul.f32 %v249, %v255
  %v265 = vsel %vm62, %v257, 0.0
  %266 = vadd.xlane.f32.xlu0 %v265
  %v267 = vpop.xlane.xlu0 %266
  %v268 = vsel %vm62, %v258, 0.0
  %269 = vadd.xlane.f32.xlu0 %v268
  %v270 = vpop.xlane.xlu0 %269
  %v271 = vsel %vm62, %v259, 0.0
  %272 = vadd.xlane.f32.xlu0 %v271
  %v273 = vpop.xlane.xlu0 %272
  %v274 = vsel %vm62, %v260, 0.0
  %275 = vadd.xlane.f32.xlu0 %v274
  %v276 = vpop.xlane.xlu0 %275
  %v277 = vsel %vm62, %v261, 0.0
  %278 = vadd.xlane.f32.xlu0 %v277
  %v279 = vpop.xlane.xlu0 %278
  %v280 = vsel %vm62, %v262, 0.0
  %281 = vadd.xlane.f32.xlu0 %v280
  %v282 = vpop.xlane.xlu0 %281
  %v283 = vsel %vm62, %v263, 0.0
  %284 = vadd.xlane.f32.xlu0 %v283
  %v285 = vpop.xlane.xlu0 %284
  %v286 = vsel %vm62, %v264, 0.0
  %287 = vadd.xlane.f32.xlu0 %v286
  %v288 = vpop.xlane.xlu0 %287
  %v297 = vlaneseq
  %v298 = vand.u32 %v297, 127
  %v299 = vlaneseq
  %v300 = vshrl.u32 %v299, 7
  %v301 = vsub.s32 %v298, %v300
  %v302 = vrot.slane %v267, %v301
  %v303 = vlaneseq
  %v304 = vshrl.u32 %v303, 7
  %v305 = vsub.s32 %v298, %v304
  %v306 = vrot.slane %v270, %v305
  %v307 = vlaneseq
  %v308 = vshrl.u32 %v307, 7
  %v309 = vsub.s32 %v298, %v308
  %v310 = vrot.slane %v273, %v309
  %v311 = vlaneseq
  %v312 = vshrl.u32 %v311, 7
  %v313 = vsub.s32 %v298, %v312
  %v314 = vrot.slane %v276, %v313
  %v315 = vlaneseq
  %v316 = vshrl.u32 %v315, 7
  %v317 = vsub.s32 %v298, %v316
  %v318 = vrot.slane %v279, %v317
  %v319 = vlaneseq
  %v320 = vshrl.u32 %v319, 7
  %v321 = vsub.s32 %v298, %v320
  %v322 = vrot.slane %v282, %v321
  %v323 = vlaneseq
  %v324 = vshrl.u32 %v323, 7
  %v325 = vsub.s32 %v298, %v324
  %v326 = vrot.slane %v285, %v325
  %v327 = vlaneseq
  %v328 = vshrl.u32 %v327, 7
  %v329 = vsub.s32 %v298, %v328
  %v330 = vrot.slane %v288, %v329
  %vm331 = vcmask 1041409
  %v332 = vsel %vm331, %v306, %v302
  %vm333 = vcmask 1042434
  %v334 = vsel %vm333, %v310, %v332
  %vm335 = vcmask 1043459
  %v336 = vsel %vm335, %v314, %v334
  %vm337 = vcmask 1044484
  %v338 = vsel %vm337, %v318, %v336
  %vm339 = vcmask 1045509
  %v340 = vsel %vm339, %v322, %v338
  %vm341 = vcmask 1046534
  %v342 = vsel %vm341, %v326, %v340
  %vm343 = vcmask 1047559
  %v344 = vsel %vm343, %v330, %v342
  %vm346 = vcmask 64512
  %v347 = vsel %vm346, %v344, -inf
  %348 = vmax.xlane.f32.xlu0 %v347
  %v349 = vpop.xlane.xlu0 %348
  %v351 = vlaneseq
  %v352 = vshrl.u32 %v351, 7
  %v353 = vsub.s32 0, %v352
  %v354 = vrot.slane %v349, %v353
  %v355 = vlaneseq
  %v356 = vshrl.u32 %v355, 7
  %v357 = vsub.s32 1, %v356
  %v358 = vrot.slane %v349, %v357
  %v359 = vlaneseq
  %v360 = vshrl.u32 %v359, 7
  %v361 = vsub.s32 2, %v360
  %v362 = vrot.slane %v349, %v361
  %v363 = vlaneseq
  %v364 = vshrl.u32 %v363, 7
  %v365 = vsub.s32 3, %v364
  %v366 = vrot.slane %v349, %v365
  %v367 = vlaneseq
  %v368 = vshrl.u32 %v367, 7
  %v369 = vsub.s32 4, %v368
  %v370 = vrot.slane %v349, %v369
  %v371 = vlaneseq
  %v372 = vshrl.u32 %v371, 7
  %v373 = vsub.s32 5, %v372
  %v374 = vrot.slane %v349, %v373
  %v375 = vlaneseq
  %v376 = vshrl.u32 %v375, 7
  %v377 = vsub.s32 6, %v376
  %v378 = vrot.slane %v349, %v377
  %v379 = vlaneseq
  %v380 = vshrl.u32 %v379, 7
  %v381 = vsub.s32 7, %v380
  %v382 = vrot.slane %v349, %v381
  %v391 = vsub.f32 %v267, %v354
  %v392 = vsub.f32 %v270, %v358
  %v393 = vsub.f32 %v273, %v362
  %v394 = vsub.f32 %v276, %v366
  %v395 = vsub.f32 %v279, %v370
  %v396 = vsub.f32 %v282, %v374
  %v397 = vsub.f32 %v285, %v378
  %v398 = vsub.f32 %v288, %v382
  %v399 = vmul.f32 %v391, 1.442695
  %v400 = vpow.pop %v399
  %v401 = vmul.f32 %v392, 1.442695
  %v402 = vpow.pop %v401
  %v403 = vmul.f32 %v393, 1.442695
  %v404 = vpow.pop %v403
  %v405 = vmul.f32 %v394, 1.442695
  %v406 = vpow.pop %v405
  %v407 = vmul.f32 %v395, 1.442695
  %v408 = vpow.pop %v407
  %v409 = vmul.f32 %v396, 1.442695
  %v410 = vpow.pop %v409
  %v411 = vmul.f32 %v397, 1.442695
  %v412 = vpow.pop %v411
  %v413 = vmul.f32 %v398, 1.442695
  %v414 = vpow.pop %v413
  %423 = vset.pattern.permute.xlu0 0
  %424 = vperm.xlu0 %423, %v400
  %v425 = vpop.permute.xlu0 %424
  %426 = vset.pattern.permute.xlu0 0
  %427 = vperm.xlu0 %426, %v402
  %v428 = vpop.permute.xlu0 %427
  %429 = vset.pattern.permute.xlu0 0
  %430 = vperm.xlu0 %429, %v404
  %v431 = vpop.permute.xlu0 %430
  %432 = vset.pattern.permute.xlu0 0
  %433 = vperm.xlu0 %432, %v406
  %v434 = vpop.permute.xlu0 %433
  %435 = vset.pattern.permute.xlu0 0
  %436 = vperm.xlu0 %435, %v408
  %v437 = vpop.permute.xlu0 %436
  %438 = vset.pattern.permute.xlu0 0
  %439 = vperm.xlu0 %438, %v410
  %v440 = vpop.permute.xlu0 %439
  %441 = vset.pattern.permute.xlu0 0
  %442 = vperm.xlu0 %441, %v412
  %v443 = vpop.permute.xlu0 %442
  %444 = vset.pattern.permute.xlu0 0
  %445 = vperm.xlu0 %444, %v414
  %v446 = vpop.permute.xlu0 %445
  %v447 = vlaneseq
  %v448 = vshrl.u32 %v447, 7
  %v449 = vsub.s32 %v298, %v448
  %v450 = vrot.slane %v425, %v449
  %v451 = vlaneseq
  %v452 = vshrl.u32 %v451, 7
  %v453 = vsub.s32 %v298, %v452
  %v454 = vrot.slane %v428, %v453
  %v455 = vlaneseq
  %v456 = vshrl.u32 %v455, 7
  %v457 = vsub.s32 %v298, %v456
  %v458 = vrot.slane %v431, %v457
  %v459 = vlaneseq
  %v460 = vshrl.u32 %v459, 7
  %v461 = vsub.s32 %v298, %v460
  %v462 = vrot.slane %v434, %v461
  %v463 = vlaneseq
  %v464 = vshrl.u32 %v463, 7
  %v465 = vsub.s32 %v298, %v464
  %v466 = vrot.slane %v437, %v465
  %v467 = vlaneseq
  %v468 = vshrl.u32 %v467, 7
  %v469 = vsub.s32 %v298, %v468
  %v470 = vrot.slane %v440, %v469
  %v471 = vlaneseq
  %v472 = vshrl.u32 %v471, 7
  %v473 = vsub.s32 %v298, %v472
  %v474 = vrot.slane %v443, %v473
  %v475 = vlaneseq
  %v476 = vshrl.u32 %v475, 7
  %v477 = vsub.s32 %v298, %v476
  %v478 = vrot.slane %v446, %v477
  %v479 = vsel %vm331, %v454, %v450
  %v480 = vsel %vm333, %v458, %v479
  %v481 = vsel %vm335, %v462, %v480
  %v482 = vsel %vm337, %v466, %v481
  %v483 = vsel %vm339, %v470, %v482
  %v484 = vsel %vm341, %v474, %v483
  %v485 = vsel %vm343, %v478, %v484
  %v487 = vsel %vm346, %v485, 0.0
  %488 = vadd.xlane.f32.xlu0 %v487
  %v489 = vpop.xlane.xlu0 %488
  %v490 = vrcp.pop %v489
  %v492 = vlaneseq
  %v493 = vshrl.u32 %v492, 7
  %v494 = vsub.s32 0, %v493
  %v495 = vrot.slane %v490, %v494
  %v496 = vlaneseq
  %v497 = vshrl.u32 %v496, 7
  %v498 = vsub.s32 1, %v497
  %v499 = vrot.slane %v490, %v498
  %v500 = vlaneseq
  %v501 = vshrl.u32 %v500, 7
  %v502 = vsub.s32 2, %v501
  %v503 = vrot.slane %v490, %v502
  %v504 = vlaneseq
  %v505 = vshrl.u32 %v504, 7
  %v506 = vsub.s32 3, %v505
  %v507 = vrot.slane %v490, %v506
  %v508 = vlaneseq
  %v509 = vshrl.u32 %v508, 7
  %v510 = vsub.s32 4, %v509
  %v511 = vrot.slane %v490, %v510
  %v512 = vlaneseq
  %v513 = vshrl.u32 %v512, 7
  %v514 = vsub.s32 5, %v513
  %v515 = vrot.slane %v490, %v514
  %v516 = vlaneseq
  %v517 = vshrl.u32 %v516, 7
  %v518 = vsub.s32 6, %v517
  %v519 = vrot.slane %v490, %v518
  %v520 = vlaneseq
  %v521 = vshrl.u32 %v520, 7
  %v522 = vsub.s32 7, %v521
  %v523 = vrot.slane %v490, %v522
  %v532 = vmul.f32 %v400, %v495
  %v533 = vmul.f32 %v402, %v499
  %v534 = vmul.f32 %v404, %v503
  %v535 = vmul.f32 %v406, %v507
  %v536 = vmul.f32 %v408, %v511
  %v537 = vmul.f32 %v410, %v515
  %v538 = vmul.f32 %v412, %v519
  %v539 = vmul.f32 %v414, %v523
  %541 = vset.pattern.permute.xlu0 0
  %542 = vperm.xlu0 %541, %v532
  %v543 = vpop.permute.xlu0 %542
  %546 = vset.pattern.permute.xlu0 0
  %547 = vperm.xlu0 %546, %v533
  %v548 = vpop.permute.xlu0 %547
  %551 = vset.pattern.permute.xlu0 0
  %552 = vperm.xlu0 %551, %v534
  %v553 = vpop.permute.xlu0 %552
  %556 = vset.pattern.permute.xlu0 0
  %557 = vperm.xlu0 %556, %v535
  %v558 = vpop.permute.xlu0 %557
  %561 = vset.pattern.permute.xlu0 0
  %562 = vperm.xlu0 %561, %v536
  %v563 = vpop.permute.xlu0 %562
  %566 = vset.pattern.permute.xlu0 0
  %567 = vperm.xlu0 %566, %v537
  %v568 = vpop.permute.xlu0 %567
  %571 = vset.pattern.permute.xlu0 0
  %572 = vperm.xlu0 %571, %v538
  %v573 = vpop.permute.xlu0 %572
  %576 = vset.pattern.permute.xlu0 0
  %577 = vperm.xlu0 %576, %v539
  %v578 = vpop.permute.xlu0 %577
  %v580 = vmul.f32 %v543, %v140
  %v581 = vmul.f32 %v548, %v141
  %v582 = vmul.f32 %v553, %v142
  %v583 = vmul.f32 %v558, %v143
  %v584 = vmul.f32 %v563, %v144
  %v585 = vmul.f32 %v568, %v145
  %v586 = vmul.f32 %v573, %v146
  %v587 = vmul.f32 %v578, %v147
  %v588 = vsel %vm164, %v580, 0.0
  %v589 = vrot.slane %v588, 4
  %v590 = vadd.f32 %v588, %v589
  %v591 = vrot.slane %v590, 2
  %v592 = vadd.f32 %v590, %v591
  %v593 = vrot.slane %v592, 1
  %v594 = vadd.f32 %v592, %v593
  %v595 = vsel %vm164, %v581, 0.0
  %v596 = vrot.slane %v595, 4
  %v597 = vadd.f32 %v595, %v596
  %v598 = vrot.slane %v597, 2
  %v599 = vadd.f32 %v597, %v598
  %v600 = vrot.slane %v599, 1
  %v601 = vadd.f32 %v599, %v600
  %v602 = vsel %vm164, %v582, 0.0
  %v603 = vrot.slane %v602, 4
  %v604 = vadd.f32 %v602, %v603
  %v605 = vrot.slane %v604, 2
  %v606 = vadd.f32 %v604, %v605
  %v607 = vrot.slane %v606, 1
  %v608 = vadd.f32 %v606, %v607
  %v609 = vsel %vm164, %v583, 0.0
  %v610 = vrot.slane %v609, 4
  %v611 = vadd.f32 %v609, %v610
  %v612 = vrot.slane %v611, 2
  %v613 = vadd.f32 %v611, %v612
  %v614 = vrot.slane %v613, 1
  %v615 = vadd.f32 %v613, %v614
  %v616 = vsel %vm164, %v584, 0.0
  %v617 = vrot.slane %v616, 4
  %v618 = vadd.f32 %v616, %v617
  %v619 = vrot.slane %v618, 2
  %v620 = vadd.f32 %v618, %v619
  %v621 = vrot.slane %v620, 1
  %v622 = vadd.f32 %v620, %v621
  %v623 = vsel %vm164, %v585, 0.0
  %v624 = vrot.slane %v623, 4
  %v625 = vadd.f32 %v623, %v624
  %v626 = vrot.slane %v625, 2
  %v627 = vadd.f32 %v625, %v626
  %v628 = vrot.slane %v627, 1
  %v629 = vadd.f32 %v627, %v628
  %v630 = vsel %vm164, %v586, 0.0
  %v631 = vrot.slane %v630, 4
  %v632 = vadd.f32 %v630, %v631
  %v633 = vrot.slane %v632, 2
  %v634 = vadd.f32 %v632, %v633
  %v635 = vrot.slane %v634, 1
  %v636 = vadd.f32 %v634, %v635
  %v637 = vsel %vm164, %v587, 0.0
  %v638 = vrot.slane %v637, 4
  %v639 = vadd.f32 %v637, %v638
  %v640 = vrot.slane %v639, 2
  %v641 = vadd.f32 %v639, %v640
  %v642 = vrot.slane %v641, 1
  %v643 = vadd.f32 %v641, %v642
  %v644 = vpack.c.bf16 %v594, %v594
  %v645 = vpack.c.bf16 %v601, %v601
  %v646 = vpack.c.bf16 %v608, %v608
  %v647 = vpack.c.bf16 %v615, %v615
  %v648 = vpack.c.bf16 %v622, %v622
  %v649 = vpack.c.bf16 %v629, %v629
  %v650 = vpack.c.bf16 %v636, %v636
  %v651 = vpack.c.bf16 %v643, %v643
  %v652 = vld [vmem:[%s5] sm:$0xff]
  %v653 = vld [vmem:[%s5 + $0x8] sm:$0xff]
  %v654 = vld [vmem:[%s5 + $0x10] sm:$0xff]
  %v655 = vld [vmem:[%s5 + $0x18] sm:$0xff]
  %v656 = vld [vmem:[%s5 + $0x20] sm:$0xff]
  %v657 = vld [vmem:[%s5 + $0x28] sm:$0xff]
  %v658 = vld [vmem:[%s5 + $0x30] sm:$0xff]
  %v659 = vld [vmem:[%s5 + $0x38] sm:$0xff]
  %v660 = vpack.c.bf16 %v653, %v652
  %v661 = vpack.c.bf16 %v655, %v654
  %v662 = vpack.c.bf16 %v657, %v656
  %v663 = vpack.c.bf16 %v659, %v658
  %v664 = vld [vmem:[%s6] sm:$0x1]
  %v666 = vlaneseq
  %v667 = vshrl.u32 %v666, 7
  %v668 = vsub.s32 0, %v667
  %v669 = vrot.slane %v664, %v668
  %v679 = vunpack.c.l.b16 %v644
  %v680 = vunpack.c.l.b16 %v645
  %v681 = vunpack.c.l.b16 %v646
  %v682 = vunpack.c.l.b16 %v647
  %v683 = vunpack.c.l.b16 %v648
  %v684 = vunpack.c.l.b16 %v649
  %v685 = vunpack.c.l.b16 %v650
  %v686 = vunpack.c.l.b16 %v651
  %v687 = vsel %vm331, %v680, %v679
  %v688 = vsel %vm333, %v681, %v687
  %v689 = vsel %vm335, %v682, %v688
  %v690 = vsel %vm337, %v683, %v689
  %v691 = vsel %vm339, %v684, %v690
  %v692 = vsel %vm341, %v685, %v691
  %v693 = vsel %vm343, %v686, %v692
  %v694 = vpack.c.b16 %v693, %v693
  %v696 = vsel %vm164, %v694, 0
  %698 = vmatprep.subr.bf16.mxu0 0
  %699 = vmatpush1.bf16.msra.mxu0 %v660
  %700 = vmatprep.subr.bf16.mxu0 0
  %701 = vmatpush1.bf16.msra.mxu0 %v661
  %702 = vmatprep.subr.bf16.mxu0 0
  %703 = vmatpush1.bf16.msra.mxu0 %v662
  %704 = vmatprep.subr.bf16.mxu0 0
  %705 = vmatpush1.bf16.msra.mxu0 %v663
  %706 = vmatprep.subr.bf16.mxu0 0
  %707 = vmatpush1.bf16.msra.mxu0 0
  %708 = vmatprep.subr.bf16.mxu0 0
  %709 = vmatpush1.bf16.msra.mxu0 0
  %710 = vmatprep.subr.bf16.mxu0 0
  %711 = vmatpush1.bf16.msra.mxu0 0
  %712 = vmatprep.subr.bf16.mxu0 0
  %713 = vmatpush1.bf16.msra.mxu0 0
  %714 = vmatprep.subr.bf16.mxu0 0
  %715 = vmatpush1.bf16.msra.mxu0 0
  %716 = vmatprep.subr.bf16.mxu0 0
  %717 = vmatpush1.bf16.msra.mxu0 0
  %718 = vmatprep.subr.bf16.mxu0 0
  %719 = vmatpush1.bf16.msra.mxu0 0
  %720 = vmatprep.subr.bf16.mxu0 0
  %721 = vmatpush1.bf16.msra.mxu0 0
  %722 = vmatprep.subr.bf16.mxu0 0
  %723 = vmatpush1.bf16.msra.mxu0 0
  %724 = vmatprep.subr.bf16.mxu0 0
  %725 = vmatpush1.bf16.msra.mxu0 0
  %726 = vmatprep.subr.bf16.mxu0 0
  %727 = vmatpush1.bf16.msra.mxu0 0
  %728 = vmatprep.subr.bf16.mxu0 0
  %729 = vmatpush1.bf16.msra.mxu0 0
  %730 = vmatprep.mubr.bf16.mxu0 0
  %731 = vmatmul.mubr.bf16.gmra.mrb[0].mxu0 %v696
  %v732 = vpop.f32.mrb[0].mxu0
  %v733 = vadd.f32 %v669, %v732
  %v734 = vpop.f32.mrb[0].mxu0
  %v735 = vpop.f32.mrb[0].mxu0
  %v736 = vpop.f32.mrb[0].mxu0
  %737 = vdwg.mxu0
  %v738 = vmax.f32 %v733, 0.0
  %v739 = vpack.c.bf16 %v738, %v738
  %v740 = vld [vmem:[%s7] sm:$0xff]
  %v741 = vld [vmem:[%s7 + $0x8] sm:$0xff]
  %v742 = vld [vmem:[%s7 + $0x10] sm:$0xff]
  %v743 = vld [vmem:[%s7 + $0x18] sm:$0xff]
  %v744 = vpack.c.bf16 %v741, %v740
  %v745 = vpack.c.bf16 %v743, %v742
  %v746 = vld [vmem:[%s8] sm:$0x1]
  %v748 = vlaneseq
  %v749 = vshrl.u32 %v748, 7
  %v750 = vsub.s32 0, %v749
  %v751 = vrot.slane %v746, %v750
  %v754 = vsel %vm62, %v739, 0
  %756 = vmatprep.subr.bf16.mxu0 0
  %757 = vmatpush1.bf16.msra.mxu0 %v744
  %758 = vmatprep.subr.bf16.mxu0 0
  %759 = vmatpush1.bf16.msra.mxu0 %v745
  %760 = vmatprep.subr.bf16.mxu0 0
  %761 = vmatpush1.bf16.msra.mxu0 0
  %762 = vmatprep.subr.bf16.mxu0 0
  %763 = vmatpush1.bf16.msra.mxu0 0
  %764 = vmatprep.subr.bf16.mxu0 0
  %765 = vmatpush1.bf16.msra.mxu0 0
  %766 = vmatprep.subr.bf16.mxu0 0
  %767 = vmatpush1.bf16.msra.mxu0 0
  %768 = vmatprep.subr.bf16.mxu0 0
  %769 = vmatpush1.bf16.msra.mxu0 0
  %770 = vmatprep.subr.bf16.mxu0 0
  %771 = vmatpush1.bf16.msra.mxu0 0
  %772 = vmatprep.subr.bf16.mxu0 0
  %773 = vmatpush1.bf16.msra.mxu0 0
  %774 = vmatprep.subr.bf16.mxu0 0
  %775 = vmatpush1.bf16.msra.mxu0 0
  %776 = vmatprep.subr.bf16.mxu0 0
  %777 = vmatpush1.bf16.msra.mxu0 0
  %778 = vmatprep.subr.bf16.mxu0 0
  %779 = vmatpush1.bf16.msra.mxu0 0
  %780 = vmatprep.subr.bf16.mxu0 0
  %781 = vmatpush1.bf16.msra.mxu0 0
  %782 = vmatprep.subr.bf16.mxu0 0
  %783 = vmatpush1.bf16.msra.mxu0 0
  %784 = vmatprep.subr.bf16.mxu0 0
  %785 = vmatpush1.bf16.msra.mxu0 0
  %786 = vmatprep.subr.bf16.mxu0 0
  %787 = vmatpush1.bf16.msra.mxu0 0
  %788 = vmatprep.mubr.bf16.mxu0 0
  %789 = vmatmul.mubr.bf16.gmra.mrb[0].mxu0 %v754
  %v790 = vpop.f32.mrb[0].mxu0
  %v791 = vadd.f32 %v751, %v790
  %v792 = vpop.f32.mrb[0].mxu0
  %v793 = vpop.f32.mrb[0].mxu0
  %v794 = vpop.f32.mrb[0].mxu0
  %795 = vdwg.mxu0
  %vm796 = vcmask 31744
  %797 = vst.msk [vmem:[%s9] sm:$0xff] %vm796, %v791
  %v798 = vlaneseq
  %v799 = vshrl.u32 %v798, 7
  %v800 = vsub.s32 %v298, %v799
  %v801 = vrot.slane %v543, %v800
  %v802 = vlaneseq
  %v803 = vshrl.u32 %v802, 7
  %v804 = vsub.s32 %v298, %v803
  %v805 = vrot.slane %v548, %v804
  %v806 = vlaneseq
  %v807 = vshrl.u32 %v806, 7
  %v808 = vsub.s32 %v298, %v807
  %v809 = vrot.slane %v553, %v808
  %v810 = vlaneseq
  %v811 = vshrl.u32 %v810, 7
  %v812 = vsub.s32 %v298, %v811
  %v813 = vrot.slane %v558, %v812
  %v814 = vlaneseq
  %v815 = vshrl.u32 %v814, 7
  %v816 = vsub.s32 %v298, %v815
  %v817 = vrot.slane %v563, %v816
  %v818 = vlaneseq
  %v819 = vshrl.u32 %v818, 7
  %v820 = vsub.s32 %v298, %v819
  %v821 = vrot.slane %v568, %v820
  %v822 = vlaneseq
  %v823 = vshrl.u32 %v822, 7
  %v824 = vsub.s32 %v298, %v823
  %v825 = vrot.slane %v573, %v824
  %v826 = vlaneseq
  %v827 = vshrl.u32 %v826, 7
  %v828 = vsub.s32 %v298, %v827
  %v829 = vrot.slane %v578, %v828
  %v830 = vsel %vm331, %v805, %v801
  %v831 = vsel %vm333, %v809, %v830
  %v832 = vsel %vm335, %v813, %v831
  %v833 = vsel %vm337, %v817, %v832
  %v834 = vsel %vm339, %v821, %v833
  %v835 = vsel %vm341, %v825, %v834
  %v836 = vsel %vm343, %v829, %v835
  %838 = vst.msk [vmem:[%s10] sm:$0xff] %vm346, %v836
  %839 = vst.msk [vmem:[%s11] sm:$0xff] %vm62, %v738
  %840 = vst.msk [vmem:[%s12] sm:$0xff] %vm346, %v344
  // Predicated region
  $region38: #{mil_forward.1} parent=0 // pred_check
    _
  $region39: #{mil_forward.1} parent=0 // pred_check_branch
    %842 = sbr.rel (0) target = $region41
  $region40: #{mil_forward.1} parent=0 // pred_region
    _
  $region41: #{mil_forward.1} parent=0 // pred_fallthru
    _
  // Predicated region
  $region42: #{mil_forward.1} parent=0 // pred_check
    _
  $region43: #{mil_forward.1} parent=0 // pred_check_branch
    %844 = sbr.rel (0) target = $region45
  $region44: #{mil_forward.1} parent=0 // pred_region
    _
  $region45: #{mil_forward.1} parent=0 // pred_fallthru
    _
  // Predicated region
  $region46: #{mil_forward.1} parent=0 // pred_check
    _
  $region47: #{mil_forward.1} parent=0 // pred_check_branch
    %846 = sbr.rel (0) target = $region49
  $region48: #{mil_forward.1} parent=0 // pred_region
    _
  $region49: #{mil_forward.1} parent=0 // pred_fallthru
    _
  // Predicated region
  $region50: #{mil_forward.1} parent=0 // pred_check
    _
  $region51: #{mil_forward.1} parent=0 // pred_check_branch
    %848 = sbr.rel (0) target = $region53
  $region52: #{mil_forward.1} parent=0 // pred_region
    _
  $region53: #{mil_forward.1} parent=0 // pred_fallthru
    _
  // Predicated region
  $region54: #{mil_forward.1} parent=0 // pred_check
    _
  $region55: #{mil_forward.1} parent=0 // pred_check_branch
    %850 = sbr.rel (0) target = $region57
  $region56: #{mil_forward.1} parent=0 // pred_region
    _
  $region57: #{mil_forward.1} parent=0 // pred_fallthru
    _
  // Predicated region
  $region58: #{mil_forward.1} parent=0 // pred_check
    _
  $region59: #{mil_forward.1} parent=0 // pred_check_branch
    %852 = sbr.rel (0) target = $region61
  $region60: #{mil_forward.1} parent=0 // pred_region
    _
  $region61: #{mil_forward.1} parent=0 // pred_fallthru
    _
  // Predicated region
  $region62: #{mil_forward.1} parent=0 // pred_check
    _
  $region63: #{mil_forward.1} parent=0 // pred_check_branch
    %854 = sbr.rel (0) target = $region65
  $region64: #{mil_forward.1} parent=0 // pred_region
    _
  $region65: #{mil_forward.1} parent=0 // pred_fallthru
    _
  // Predicated region
  $region66: #{mil_forward.1} parent=0 // pred_check
    _
  $region67: #{mil_forward.1} parent=0 // pred_check_branch
    %856 = sbr.rel (0) target = $region69
  $region68: #{mil_forward.1} parent=0 // pred_region
    _
  $region69: #{mil_forward.1} parent=0 // pred_fallthru
    _

</llo_original>
